<compile_context>
chip_gen: v7x
topology: tpu7x:2x2x1
jax: 0.10.0
libtpu: 0.0.40
codegen_flags: <defaults>
</compile_context>

<pallas_src>
import math

import jax
import jax.numpy as jnp
from jax.experimental import pallas as pl
from jax.experimental.pallas import tpu as pltpu

LOCAL_CHANNELS = 16
GLOBAL_CHANNELS = 16
INPUT_DIM = LOCAL_CHANNELS + GLOBAL_CHANNELS          # D = 32
HISTORY_STEPS = 20
OUT_DIM = HISTORY_STEPS * 2                           # 40
LN_EPS = 1e-5

PACK = 4                        # batch rows lane-packed per 128-lane vreg row
D4 = PACK * INPUT_DIM           # 128  (exactly one lane width)
O4 = PACK * OUT_DIM             # 160
W_SLAB_COLS = 2 * D4 + O4       # 416 = [W1_bd | W2_bd | W3_bd]

# row layout inside the packed [8, O4] f32 vector-parameter block
_ROW_B1, _ROW_G1, _ROW_BE1, _ROW_B2, _ROW_G2, _ROW_BE2, _ROW_B3 = range(7)


def _round_up(x, m):
    return ((x + m - 1) // m) * m


# ----------------------------- Pallas kernel ------------------------------ #

def _packed_ln_relu(h, seg, gamma, beta):
    """LayerNorm over each 32-lane segment (single-pass stats on the MXU) + ReLU.

    h     : [TBp, 128] f32 (4 logical rows per vreg row)
    seg   : [128, 128] f32, seg[i,j] = 1/32 if i,j in the same 32-lane segment
    gamma/beta : [1, 128] f32, per-segment LN params tiled x4 along lanes
    """
    mu = jnp.dot(h, seg, preferred_element_type=jnp.float32)        # E[h]
    ex2 = jnp.dot(h * h, seg, preferred_element_type=jnp.float32)   # E[h^2]
    var = jnp.maximum(ex2 - mu * mu, 0.0)                           # guard cancellation
    y = (h - mu) * jax.lax.rsqrt(var + LN_EPS) * gamma + beta
    return jnp.maximum(y, 0.0)


def mlp_recon_kernel(x_ref, w_ref, seg_ref, vec_ref, o_ref):
    """Fused MLP on lane-packed rows.

    x_ref   : [TBp, 128] bf16  -- 4 batch rows per vreg row (segments of 32 lanes)
    w_ref   : [128, 416] bf16  -- [blockdiag4(W1) | blockdiag4(W2) | blockdiag4(W3)]
    seg_ref : [128, 128] f32   -- segment-averaging matrix for LN stats
    vec_ref : [8, 160]  f32    -- b1,g1,be1,b2,g2,be2,b3 (each tiled x4 on lanes)
    o_ref   : [TBp, 160]       -- 4 output rows (40 each) per vreg row
    """
    w1 = w_ref[:, 0:D4]
    w2 = w_ref[:, D4:2 * D4]
    w3 = w_ref[:, 2 * D4:2 * D4 + O4]
    seg = seg_ref[...]

    b1 = vec_ref[_ROW_B1:_ROW_B1 + 1, :D4]
    g1 = vec_ref[_ROW_G1:_ROW_G1 + 1, :D4]
    be1 = vec_ref[_ROW_BE1:_ROW_BE1 + 1, :D4]
    b2 = vec_ref[_ROW_B2:_ROW_B2 + 1, :D4]
    g2 = vec_ref[_ROW_G2:_ROW_G2 + 1, :D4]
    be2 = vec_ref[_ROW_BE2:_ROW_BE2 + 1, :D4]
    b3 = vec_ref[_ROW_B3:_ROW_B3 + 1, :O4]

    x = x_ref[...]                                                     # bf16
    h = jnp.dot(x, w1, preferred_element_type=jnp.float32) + b1
    h = _packed_ln_relu(h, seg, g1, be1)
    h = jnp.dot(h.astype(jnp.bfloat16), w2, preferred_element_type=jnp.float32) + b2
    h = _packed_ln_relu(h, seg, g2, be2)
    o_ref[...] = (jnp.dot(h.astype(jnp.bfloat16), w3,
                          preferred_element_type=jnp.float32) + b3).astype(o_ref.dtype)


# ------------------------------ kernel driver ------------------------------ #

def _choose_tile(B, tb=None, tb_max=4096):
    """Pick the row tile TB (multiple of 64 so the packed tile keeps bf16
    sublane alignment) and the padded batch size.

    Default policy: aim for ~4 grid steps so both v7x TensorCores get work and
    the ~0.35us per-step overhead is amortized, capping the tile at 4096 rows
    (< 2.5 MiB VMEM including double buffering on every TPU generation)."""
    if tb is not None:
        assert tb % 64 == 0, "tb must be a multiple of 64"
        return tb, _round_up(B, tb)
    b = _round_up(max(B, 1), 64)
    tb = min(tb_max, max(64, _round_up(-(-b // 4), 64)))
    return tb, _round_up(b, tb)


def run_mlp_kernel(agent_embed, kparams, *, tb=None, out_dtype=jnp.float32):
    """agent_embed: [B, 32] bf16 -> [B, 40] out_dtype."""
    w_slab, seg, vec = kparams
    B = agent_embed.shape[0]
    TB, B_pad = _choose_tile(B, tb)
    if B_pad != B:
        # Padded rows are all-zero; they go through LayerNorm with var == 0,
        # which is finite only because LN_EPS > 0.  They are sliced off below.
        agent_embed = jnp.pad(agent_embed, ((0, B_pad - B), (0, 0)))
    # Lane-pack 4 rows per 128-lane vreg row; [B_pad,32] -> [B_pad/4,128] is a
    # pure row-major relabeling (free).
    x_packed = agent_embed.reshape(B_pad // PACK, D4)
    TBp = TB // PACK
    grid = (B_pad // TB,)

    out_bytes = jnp.dtype(out_dtype).itemsize
    weight_bytes = D4 * W_SLAB_COLS * 2 + D4 * D4 * 4 + 8 * O4 * 4
    cost = pl.CostEstimate(
        flops=B_pad * 2 * (2 * INPUT_DIM * INPUT_DIM + INPUT_DIM * OUT_DIM)
        + (B_pad // PACK) * 4 * 2 * D4 * D4,          # LN mean / E[h^2] matmuls
        transcendentals=2 * B_pad,                    # rsqrt per row per LayerNorm
        bytes_accessed=B_pad * INPUT_DIM * 2 + B_pad * OUT_DIM * out_bytes
        + weight_bytes,
    )

    out = pl.pallas_call(
        mlp_recon_kernel,
        out_shape=jax.ShapeDtypeStruct((B_pad // PACK, O4), out_dtype),
        grid=grid,
        in_specs=[
            pl.BlockSpec((TBp, D4), lambda i: (i, 0)),              # packed x tile
            pl.BlockSpec((D4, W_SLAB_COLS), lambda i: (0, 0)),      # weight slab (resident)
            pl.BlockSpec((D4, D4), lambda i: (0, 0)),               # seg-avg matrix (resident)
            pl.BlockSpec((8, O4), lambda i: (0, 0)),                # packed vec params (resident)
        ],
        out_specs=pl.BlockSpec((TBp, O4), lambda i: (i, 0)),
        compiler_params=pltpu.CompilerParams(
            dimension_semantics=("parallel",)),
        cost_estimate=cost,
    )(x_packed, w_slab, seg, vec)
    return out.reshape(B_pad, OUT_DIM)[:B]


# ----------------------------- parameter init ----------------------------- #

def _xavier_uniform(key, fan_in, fan_out):
    """Matches nn.init.xavier_uniform_ on a PyTorch [out, in] weight; returned
    transposed as [in, out] for the x @ W convention."""
    bound = math.sqrt(6.0 / (fan_in + fan_out))
    w = jax.random.uniform(key, (fan_out, fan_in), jnp.float32, -bound, bound)
    return jnp.transpose(w)


def init_params(key):
    k1, k2, k3 = jax.random.split(key, 3)
    D, O = INPUT_DIM, OUT_DIM
    return (
        _xavier_uniform(k1, D, D), jnp.zeros((D,), jnp.float32),
        jnp.ones((D,), jnp.float32), jnp.zeros((D,), jnp.float32),
        _xavier_uniform(k2, D, D), jnp.zeros((D,), jnp.float32),
        jnp.ones((D,), jnp.float32), jnp.zeros((D,), jnp.float32),
        _xavier_uniform(k3, D, O), jnp.zeros((O,), jnp.float32),
    )


def _block_diag4(w):
    din, dout = w.shape
    out = jnp.zeros((PACK * din, PACK * dout), w.dtype)
    for i in range(PACK):
        out = out.at[i * din:(i + 1) * din, i * dout:(i + 1) * dout].set(w)
    return out


def pack_params(params):
    """f32 master params -> kernel params:
       w_slab [128,416] bf16  block-diagonal-x4 W1|W2|W3
       seg    [128,128] f32   per-32-lane-segment averaging matrix (LN stats)
       vec    [8,160]   f32   biases / LN gamma,beta, each tiled x4 on lanes."""
    w1, b1, g1, be1, w2, b2, g2, be2, w3, b3 = params
    w_slab = jnp.concatenate(
        [_block_diag4(w1), _block_diag4(w2), _block_diag4(w3)], axis=1
    ).astype(jnp.bfloat16)

    lane = jnp.arange(D4)
    seg = ((lane[:, None] // INPUT_DIM) == (lane[None, :] // INPUT_DIM))
    seg = seg.astype(jnp.float32) / INPUT_DIM

    def tile4(v):
        return jnp.tile(v.reshape(-1), PACK)

    vec = jnp.zeros((8, O4), jnp.float32)
    vec = vec.at[_ROW_B1, :D4].set(tile4(b1))
    vec = vec.at[_ROW_G1, :D4].set(tile4(g1))
    vec = vec.at[_ROW_BE1, :D4].set(tile4(be1))
    vec = vec.at[_ROW_B2, :D4].set(tile4(b2))
    vec = vec.at[_ROW_G2, :D4].set(tile4(g2))
    vec = vec.at[_ROW_BE2, :D4].set(tile4(be2))
    vec = vec.at[_ROW_B3, :O4].set(tile4(b3))
    return (w_slab, seg, vec)


# ------------------------------ forward glue ------------------------------ #

def mlp_reconstructor_forward(kparams, encoder_outputs, inputs, *, tb=None):
    """Mirrors MLPReconstructor.forward.

    encoder_outputs: [N, D]
    inputs: {'agent_index': [B] int32, 'x': [N, T, F>=2]}
    returns dict with 'score'/'x0': [B, 1, HISTORY_STEPS, 2], 'gt': [B, 1, T, 2]
    """
    agent_index = inputs['agent_index']
    # TODO(synk): fuse this row gather + bf16 cast into the kernel via
    # PrefetchScalarGridSpec(num_scalar_prefetch=1) to save an HBM round trip.
    agent_embed = jnp.take(encoder_outputs, agent_index, axis=0).astype(jnp.bfloat16)
    y = run_mlp_kernel(agent_embed, kparams, tb=tb)                      # [B, 40] f32
    x0 = y.reshape(-1, HISTORY_STEPS, 2)[:, None, :, :]                  # [B,1,H,2]
    gt = jnp.take(inputs['x'], agent_index, axis=0)[:, :, :2][:, None]   # [B,1,T,2]
    return {'score': x0, 'std': None, 'z': None, 'gt': gt, 'x0': x0}


# --------------------------- pure-JAX reference ---------------------------- #

def _ref_layernorm(h, gamma, beta):
    mu = jnp.mean(h, axis=-1, keepdims=True)
    var = jnp.mean((h - mu) ** 2, axis=-1, keepdims=True)
    return (h - mu) * jax.lax.rsqrt(var + LN_EPS) * gamma + beta


def _reference(params, agent_embed):
    """Same operand precisions as the kernel: bf16 matmuls, f32 LN/accumulate."""
    w1, b1, g1, be1, w2, b2, g2, be2, w3, b3 = params
    x = agent_embed.astype(jnp.bfloat16)
    h = jnp.dot(x, w1.astype(jnp.bfloat16), preferred_element_type=jnp.float32) + b1
    h = jnp.maximum(_ref_layernorm(h, g1, be1), 0.0)
    h = jnp.dot(h.astype(jnp.bfloat16), w2.astype(jnp.bfloat16),
                preferred_element_type=jnp.float32) + b2
    h = jnp.maximum(_ref_layernorm(h, g2, be2), 0.0)
    return jnp.dot(h.astype(jnp.bfloat16), w3.astype(jnp.bfloat16),
                   preferred_element_type=jnp.float32) + b3


if __name__ == "__main__":
    key = jax.random.PRNGKey(0)
    k_param, k_enc, k_x = jax.random.split(key, 3)

    N, T, B = 16, HISTORY_STEPS, 4   # nodes in scene, timesteps, num agents
    params = init_params(k_param)
    kparams = pack_params(params)
    encoder_outputs = jax.random.normal(k_enc, (N, INPUT_DIM), jnp.float32)
    inputs = {
        'agent_index': jnp.array([0, 3, 7, 12], jnp.int32),
        'x': jax.random.normal(k_x, (N, T, 3), jnp.float32),
    }

    # ---- check 1: small batch, single-tile path ----
    out = mlp_reconstructor_forward(kparams, encoder_outputs, inputs)
    jax.block_until_ready(out['x0'])

    agent_embed = jnp.take(encoder_outputs, inputs['agent_index'], axis=0)
    ref = _reference(params, agent_embed).reshape(-1, HISTORY_STEPS, 2)[:, None]
    assert out['x0'].shape == (B, 1, HISTORY_STEPS, 2)
    assert out['gt'].shape == (B, 1, T, 2)
    # Tolerance covers bf16 operand rounding divergence between the packed
    # (block-diagonal, single-pass LN) and unpacked reference compute orders.
    assert jnp.allclose(out['x0'], ref, atol=2e-2, rtol=2e-2)

    # ---- check 2: multi-tile path (grid > 1, B not a multiple of 4 / tile) ----
    k_idx = jax.random.PRNGKey(1)
    B2 = 199                                   # with tb=64 -> B_pad=256, grid=(4,)
    idx2 = jax.random.randint(k_idx, (B2,), 0, N, jnp.int32)
    inputs2 = {'agent_index': idx2, 'x': inputs['x']}
    out2 = mlp_reconstructor_forward(kparams, encoder_outputs, inputs2, tb=64)
    jax.block_until_ready(out2['x0'])
    ref2 = _reference(params, jnp.take(encoder_outputs, idx2, axis=0)
                      ).reshape(-1, HISTORY_STEPS, 2)[:, None]
    assert out2['x0'].shape == (B2, 1, HISTORY_STEPS, 2)
    assert jnp.allclose(out2['x0'], ref2, atol=2e-2, rtol=2e-2)

    print("KERNEL_OK")
</pallas_src>

<mosaic_0001>
module attributes {stable_mosaic.version = 11 : i64} {
  func.func @mlp_recon_kernel(%arg0: i32, %arg1: memref<16x128xbf16, #tpu.memory_space<vmem>>, %arg2: memref<128x416xbf16, #tpu.memory_space<vmem>>, %arg3: memref<128x128xf32, #tpu.memory_space<vmem>>, %arg4: memref<8x160xf32, #tpu.memory_space<vmem>>, %arg5: memref<16x160xf32, #tpu.memory_space<vmem>>) attributes {dimension_semantics = [#tpu.dimension_semantics<parallel>], iteration_bounds = array<i64: 1>, scalar_prefetch = 0 : i64, scratch_operands = 0 : i64, tpu.core_type = #tpu.core_type<tc>, window_params = [{transform_indices = @transform_0, window_bounds = array<i64: 16, 128>}, {pipeline_mode = #tpu.pipeline_mode<synchronous>, transform_indices = @transform_1, window_bounds = array<i64: 128, 416>}, {pipeline_mode = #tpu.pipeline_mode<synchronous>, transform_indices = @transform_2, window_bounds = array<i64: 128, 128>}, {pipeline_mode = #tpu.pipeline_mode<synchronous>, transform_indices = @transform_3, window_bounds = array<i64: 8, 160>}, {transform_indices = @transform_4, window_bounds = array<i64: 16, 160>}]} {
    %c0 = arith.constant 0 : index
    %c0_0 = arith.constant 0 : index
    %0 = vector.load %arg2[%c0, %c0_0] : memref<128x416xbf16, #tpu.memory_space<vmem>>, vector<128x128xbf16>
    %c0_1 = arith.constant 0 : index
    %c128 = arith.constant 128 : index
    %1 = vector.load %arg2[%c0_1, %c128] : memref<128x416xbf16, #tpu.memory_space<vmem>>, vector<128x128xbf16>
    %c0_2 = arith.constant 0 : index
    %c256 = arith.constant 256 : index
    %2 = vector.load %arg2[%c0_2, %c256] : memref<128x416xbf16, #tpu.memory_space<vmem>>, vector<128x160xbf16>
    %c0_3 = arith.constant 0 : index
    %c0_4 = arith.constant 0 : index
    %3 = vector.load %arg3[%c0_3, %c0_4] : memref<128x128xf32, #tpu.memory_space<vmem>>, vector<128x128xf32>
    %c0_5 = arith.constant 0 : index
    %c0_6 = arith.constant 0 : index
    %4 = vector.load %arg4[%c0_5, %c0_6] : memref<8x160xf32, #tpu.memory_space<vmem>>, vector<1x128xf32>
    %c1 = arith.constant 1 : index
    %c0_7 = arith.constant 0 : index
    %5 = vector.load %arg4[%c1, %c0_7] : memref<8x160xf32, #tpu.memory_space<vmem>>, vector<1x128xf32>
    %c2 = arith.constant 2 : index
    %c0_8 = arith.constant 0 : index
    %6 = vector.load %arg4[%c2, %c0_8] : memref<8x160xf32, #tpu.memory_space<vmem>>, vector<1x128xf32>
    %c3 = arith.constant 3 : index
    %c0_9 = arith.constant 0 : index
    %7 = vector.load %arg4[%c3, %c0_9] : memref<8x160xf32, #tpu.memory_space<vmem>>, vector<1x128xf32>
    %c4 = arith.constant 4 : index
    %c0_10 = arith.constant 0 : index
    %8 = vector.load %arg4[%c4, %c0_10] : memref<8x160xf32, #tpu.memory_space<vmem>>, vector<1x128xf32>
    %c5 = arith.constant 5 : index
    %c0_11 = arith.constant 0 : index
    %9 = vector.load %arg4[%c5, %c0_11] : memref<8x160xf32, #tpu.memory_space<vmem>>, vector<1x128xf32>
    %c6 = arith.constant 6 : index
    %c0_12 = arith.constant 0 : index
    %10 = vector.load %arg4[%c6, %c0_12] : memref<8x160xf32, #tpu.memory_space<vmem>>, vector<1x160xf32>
    %c0_13 = arith.constant 0 : index
    %c0_14 = arith.constant 0 : index
    %11 = vector.load %arg1[%c0_13, %c0_14] : memref<16x128xbf16, #tpu.memory_space<vmem>>, vector<16x128xbf16>
    %cst = arith.constant dense<0.000000e+00> : vector<16x128xf32>
    %12 = tpu.matmul %11, %0, %cst {dimension_numbers = #tpu.dot_dimension_numbers<[1], [0], [0], [1], [0, 0, 1, 1], [], []>} : vector<16x128xbf16>, vector<128x128xbf16>, vector<16x128xf32> -> vector<16x128xf32>
    %13 = vector.broadcast %4 : vector<1x128xf32> to vector<16x128xf32>
    %14 = arith.addf %12, %13 : vector<16x128xf32>
    %cst_15 = arith.constant dense<0.000000e+00> : vector<16x128xf32>
    %15 = tpu.matmul %14, %3, %cst_15 {dimension_numbers = #tpu.dot_dimension_numbers<[1], [0], [0], [1], [0, 0, 1, 1], [], []>} : vector<16x128xf32>, vector<128x128xf32>, vector<16x128xf32> -> vector<16x128xf32>
    %16 = arith.mulf %14, %14 : vector<16x128xf32>
    %cst_16 = arith.constant dense<0.000000e+00> : vector<16x128xf32>
    %17 = tpu.matmul %16, %3, %cst_16 {dimension_numbers = #tpu.dot_dimension_numbers<[1], [0], [0], [1], [0, 0, 1, 1], [], []>} : vector<16x128xf32>, vector<128x128xf32>, vector<16x128xf32> -> vector<16x128xf32>
    %18 = arith.mulf %15, %15 : vector<16x128xf32>
    %19 = arith.subf %17, %18 : vector<16x128xf32>
    %cst_17 = arith.constant 0.000000e+00 : f32
    %20 = vector.broadcast %cst_17 : f32 to vector<16x128xf32>
    %21 = arith.maximumf %19, %20 : vector<16x128xf32>
    %22 = arith.subf %14, %15 : vector<16x128xf32>
    %cst_18 = arith.constant 9.99999974E-6 : f32
    %23 = vector.broadcast %cst_18 : f32 to vector<16x128xf32>
    %24 = arith.addf %21, %23 : vector<16x128xf32>
    %25 = math.rsqrt %24 : vector<16x128xf32>
    %26 = arith.mulf %22, %25 : vector<16x128xf32>
    %27 = vector.broadcast %5 : vector<1x128xf32> to vector<16x128xf32>
    %28 = arith.mulf %26, %27 : vector<16x128xf32>
    %29 = vector.broadcast %6 : vector<1x128xf32> to vector<16x128xf32>
    %30 = arith.addf %28, %29 : vector<16x128xf32>
    %cst_19 = arith.constant 0.000000e+00 : f32
    %31 = vector.broadcast %cst_19 : f32 to vector<16x128xf32>
    %32 = arith.maximumf %30, %31 : vector<16x128xf32>
    %33 = arith.truncf %32 : vector<16x128xf32> to vector<16x128xbf16>
    %cst_20 = arith.constant dense<0.000000e+00> : vector<16x128xf32>
    %34 = tpu.matmul %33, %1, %cst_20 {dimension_numbers = #tpu.dot_dimension_numbers<[1], [0], [0], [1], [0, 0, 1, 1], [], []>} : vector<16x128xbf16>, vector<128x128xbf16>, vector<16x128xf32> -> vector<16x128xf32>
    %35 = vector.broadcast %7 : vector<1x128xf32> to vector<16x128xf32>
    %36 = arith.addf %34, %35 : vector<16x128xf32>
    %cst_21 = arith.constant dense<0.000000e+00> : vector<16x128xf32>
    %37 = tpu.matmul %36, %3, %cst_21 {dimension_numbers = #tpu.dot_dimension_numbers<[1], [0], [0], [1], [0, 0, 1, 1], [], []>} : vector<16x128xf32>, vector<128x128xf32>, vector<16x128xf32> -> vector<16x128xf32>
    %38 = arith.mulf %36, %36 : vector<16x128xf32>
    %cst_22 = arith.constant dense<0.000000e+00> : vector<16x128xf32>
    %39 = tpu.matmul %38, %3, %cst_22 {dimension_numbers = #tpu.dot_dimension_numbers<[1], [0], [0], [1], [0, 0, 1, 1], [], []>} : vector<16x128xf32>, vector<128x128xf32>, vector<16x128xf32> -> vector<16x128xf32>
    %40 = arith.mulf %37, %37 : vector<16x128xf32>
    %41 = arith.subf %39, %40 : vector<16x128xf32>
    %cst_23 = arith.constant 0.000000e+00 : f32
    %42 = vector.broadcast %cst_23 : f32 to vector<16x128xf32>
    %43 = arith.maximumf %41, %42 : vector<16x128xf32>
    %44 = arith.subf %36, %37 : vector<16x128xf32>
    %cst_24 = arith.constant 9.99999974E-6 : f32
    %45 = vector.broadcast %cst_24 : f32 to vector<16x128xf32>
    %46 = arith.addf %43, %45 : vector<16x128xf32>
    %47 = math.rsqrt %46 : vector<16x128xf32>
    %48 = arith.mulf %44, %47 : vector<16x128xf32>
    %49 = vector.broadcast %8 : vector<1x128xf32> to vector<16x128xf32>
    %50 = arith.mulf %48, %49 : vector<16x128xf32>
    %51 = vector.broadcast %9 : vector<1x128xf32> to vector<16x128xf32>
    %52 = arith.addf %50, %51 : vector<16x128xf32>
    %cst_25 = arith.constant 0.000000e+00 : f32
    %53 = vector.broadcast %cst_25 : f32 to vector<16x128xf32>
    %54 = arith.maximumf %52, %53 : vector<16x128xf32>
    %55 = arith.truncf %54 : vector<16x128xf32> to vector<16x128xbf16>
    %cst_26 = arith.constant dense<0.000000e+00> : vector<16x160xf32>
    %56 = tpu.matmul %55, %2, %cst_26 {dimension_numbers = #tpu.dot_dimension_numbers<[1], [0], [0], [1], [0, 0, 1, 1], [], []>} : vector<16x128xbf16>, vector<128x160xbf16>, vector<16x160xf32> -> vector<16x160xf32>
    %57 = vector.broadcast %10 : vector<1x160xf32> to vector<16x160xf32>
    %58 = arith.addf %56, %57 : vector<16x160xf32>
    %c0_27 = arith.constant 0 : index
    %c0_28 = arith.constant 0 : index
    %59 = vector.load %arg5[%c0_27, %c0_28] : memref<16x160xf32, #tpu.memory_space<vmem>>, vector<16x160xf32>
    tpu.vector_store %arg5[%c0_27, %c0_28], %58 {strides = array<i32>} : memref<16x160xf32, #tpu.memory_space<vmem>>, vector<16x160xf32>,
    return
  }
  func.func @transform_0(%arg0: i32) -> (i32, i32) {
    %c0_i32 = arith.constant 0 : i32
    %c0_i32_0 = arith.constant 0 : i32
    return %arg0, %c0_i32 : i32, i32
  }
  func.func @transform_1(%arg0: i32) -> (i32, i32) {
    %c0_i32 = arith.constant 0 : i32
    %c0_i32_0 = arith.constant 0 : i32
    %c0_i32_1 = arith.constant 0 : i32
    return %c0_i32, %c0_i32_0 : i32, i32
  }
  func.func @transform_2(%arg0: i32) -> (i32, i32) {
    %c0_i32 = arith.constant 0 : i32
    %c0_i32_0 = arith.constant 0 : i32
    %c0_i32_1 = arith.constant 0 : i32
    return %c0_i32, %c0_i32_0 : i32, i32
  }
  func.func @transform_3(%arg0: i32) -> (i32, i32) {
    %c0_i32 = arith.constant 0 : i32
    %c0_i32_0 = arith.constant 0 : i32
    %c0_i32_1 = arith.constant 0 : i32
    return %c0_i32, %c0_i32_0 : i32, i32
  }
  func.func @transform_4(%arg0: i32) -> (i32, i32) {
    %c0_i32 = arith.constant 0 : i32
    %c0_i32_0 = arith.constant 0 : i32
    return %arg0, %c0_i32 : i32, i32
  }
}

</mosaic_0001>

<llo_original>
// kernel: tpu_custom_call.1
$region0: #{tpu_custom_call.1}
  #allocation0 [shape = 'u32[]', space=smem, size = 0x4, offset = 0x4, fixed_abs, tag = 'smem constant byte address 0x4 - core index']
  #allocation1 [shape = 'u32[144,128]{1,0:T(1,128)}', space=vmem, size = 0x12000, scoped, tag = 'internal scratch']
  %s0 = inlined_call_operand.vmem [shape: bf16[16,128], index: 0, kind: input, shape index: {}]
  %s1 = inlined_call_operand.vmem [shape: bf16[128,416], index: 1, kind: input, shape index: {}]
  %s2 = inlined_call_operand.vmem [shape: f32[128,128], index: 2, kind: input, shape index: {}]
  %s3 = inlined_call_operand.vmem [shape: f32[8,160], index: 3, kind: input, shape index: {}]
  %s4 = inlined_call_operand.hbm [shape: f32[16,160], index: 4, kind: output, shape index: {}]
  %s5 = sld [smem:[#allocation0]]
  $region26: #{tpu_custom_call.1} parent=0
    _
  %s7 = ssub.s32 1, %s5
  %s8 = scalar_select 0, %s7, %s5
  $region1: #{tpu_custom_call.1} parent=0
    #allocation2 [shape = 'u8[16384]{0}', space=vmem, size = 0x4000, scoped, tag = 'output window, operand 0, single buffered']
    #allocation3 [shape = 's32[1]{0}', space=sflag, size = 0x4, scoped, tag = 'scoped memory for tpu_custom_call.1']
    %9 = vsyncpa [#allocation3], 0
    // Predicated region
    $region2: #{tpu_custom_call.1} parent=1 // pred_check
      _
    $region3: #{tpu_custom_call.1} parent=1 // pred_check_branch
      %11 = sbr.rel (0) target = $region5
    $region4: #{tpu_custom_call.1} parent=1 // pred_region
      _
    $region5: #{tpu_custom_call.1} parent=1 // pred_fallthru
      _
    // Predicated region
    $region6: #{tpu_custom_call.1} parent=1 // pred_check
      _
    $region7: #{tpu_custom_call.1} parent=1 // pred_check_branch
      %13 = sbr.rel (0) target = $region9
    $region8: #{tpu_custom_call.1} parent=1 // pred_region
      _
    $region9: #{tpu_custom_call.1} parent=1 // pred_fallthru
      _
    // Predicated region
    $region10: #{tpu_custom_call.1} parent=1 // pred_check
      _
    $region11: #{tpu_custom_call.1} parent=1 // pred_check_branch
      %15 = sbr.rel (0) target = $region13
    $region12: #{tpu_custom_call.1} parent=1 // pred_region
      _
    $region13: #{tpu_custom_call.1} parent=1 // pred_fallthru
      _
    // Predicated region
    $region14: #{tpu_custom_call.1} parent=1 // pred_check
      _
    $region15: #{tpu_custom_call.1} parent=1 // pred_check_branch
      %17 = sbr.rel (0) target = $region17
    $region16: #{tpu_custom_call.1} parent=1 // pred_region
      _
    $region17: #{tpu_custom_call.1} parent=1 // pred_fallthru
      _
    %v19 = vld [vmem:[%s1] sm:$0xf]
    %v20 = vld [vmem:[%s1 + $0x10] sm:$0xf]
    %v21 = vld [vmem:[%s1 + $0x20] sm:$0xf]
    %v22 = vld [vmem:[%s1 + $0x30] sm:$0xf]
    %v23 = vld [vmem:[%s1 + $0x40] sm:$0xf]
    %v24 = vld [vmem:[%s1 + $0x50] sm:$0xf]
    %v25 = vld [vmem:[%s1 + $0x60] sm:$0xf]
    %v26 = vld [vmem:[%s1 + $0x70] sm:$0xf]
    %v27 = vld [vmem:[%s1 + $0x80] sm:$0xf]
    %v28 = vld [vmem:[%s1 + $0x90] sm:$0xf]
    %v29 = vld [vmem:[%s1 + $0xa0] sm:$0xf]
    %v30 = vld [vmem:[%s1 + $0xb0] sm:$0xf]
    %v31 = vld [vmem:[%s1 + $0xc0] sm:$0xf]
    %v32 = vld [vmem:[%s1 + $0xd0] sm:$0xf]
    %v33 = vld [vmem:[%s1 + $0xe0] sm:$0xf]
    %v34 = vld [vmem:[%s1 + $0xf0] sm:$0xf]
    %v35 = vld [vmem:[%s1 + $0x4] sm:$0xf]
    %v36 = vld [vmem:[%s1 + $0x14] sm:$0xf]
    %v37 = vld [vmem:[%s1 + $0x24] sm:$0xf]
    %v38 = vld [vmem:[%s1 + $0x34] sm:$0xf]
    %v39 = vld [vmem:[%s1 + $0x44] sm:$0xf]
    %v40 = vld [vmem:[%s1 + $0x54] sm:$0xf]
    %v41 = vld [vmem:[%s1 + $0x64] sm:$0xf]
    %v42 = vld [vmem:[%s1 + $0x74] sm:$0xf]
    %v43 = vld [vmem:[%s1 + $0x84] sm:$0xf]
    %v44 = vld [vmem:[%s1 + $0x94] sm:$0xf]
    %v45 = vld [vmem:[%s1 + $0xa4] sm:$0xf]
    %v46 = vld [vmem:[%s1 + $0xb4] sm:$0xf]
    %v47 = vld [vmem:[%s1 + $0xc4] sm:$0xf]
    %v48 = vld [vmem:[%s1 + $0xd4] sm:$0xf]
    %v49 = vld [vmem:[%s1 + $0xe4] sm:$0xf]
    %v50 = vld [vmem:[%s1 + $0xf4] sm:$0xf]
    %v51 = vld [vmem:[%s1 + $0x8] sm:$0xff]
    %v52 = vld [vmem:[%s1 + $0x18] sm:$0xff]
    %v53 = vld [vmem:[%s1 + $0x28] sm:$0xff]
    %v54 = vld [vmem:[%s1 + $0x38] sm:$0xff]
    %v55 = vld [vmem:[%s1 + $0x48] sm:$0xff]
    %v56 = vld [vmem:[%s1 + $0x58] sm:$0xff]
    %v57 = vld [vmem:[%s1 + $0x68] sm:$0xff]
    %v58 = vld [vmem:[%s1 + $0x78] sm:$0xff]
    %v59 = vld [vmem:[%s1 + $0x88] sm:$0xff]
    %v60 = vld [vmem:[%s1 + $0x98] sm:$0xff]
    %v61 = vld [vmem:[%s1 + $0xa8] sm:$0xff]
    %v62 = vld [vmem:[%s1 + $0xb8] sm:$0xff]
    %v63 = vld [vmem:[%s1 + $0xc8] sm:$0xff]
    %v64 = vld [vmem:[%s1 + $0xd8] sm:$0xff]
    %v65 = vld [vmem:[%s1 + $0xe8] sm:$0xff]
    %v66 = vld [vmem:[%s1 + $0xf8] sm:$0xff]
    %v67 = vld [vmem:[%s2] sm:$0xff]
    %v68 = vld [vmem:[%s2 + $0x8] sm:$0xff]
    %v69 = vld [vmem:[%s2 + $0x10] sm:$0xff]
    %v70 = vld [vmem:[%s2 + $0x18] sm:$0xff]
    %v71 = vld [vmem:[%s2 + $0x20] sm:$0xff]
    %v72 = vld [vmem:[%s2 + $0x28] sm:$0xff]
    %v73 = vld [vmem:[%s2 + $0x30] sm:$0xff]
    %v74 = vld [vmem:[%s2 + $0x38] sm:$0xff]
    %v75 = vld [vmem:[%s2 + $0x40] sm:$0xff]
    %v76 = vld [vmem:[%s2 + $0x48] sm:$0xff]
    %v77 = vld [vmem:[%s2 + $0x50] sm:$0xff]
    %v78 = vld [vmem:[%s2 + $0x58] sm:$0xff]
    %v79 = vld [vmem:[%s2 + $0x60] sm:$0xff]
    %v80 = vld [vmem:[%s2 + $0x68] sm:$0xff]
    %v81 = vld [vmem:[%s2 + $0x70] sm:$0xff]
    %v82 = vld [vmem:[%s2 + $0x78] sm:$0xff]
    %v83 = vld [vmem:[%s3] ss:$0 sm:$0xff]
    %v84 = vld [vmem:[%s3 + $0x1] ss:$0 sm:$0xff]
    %v85 = vld [vmem:[%s3 + $0x2] ss:$0 sm:$0xff]
    %v86 = vld [vmem:[%s3 + $0x3] ss:$0 sm:$0xff]
    %v87 = vld [vmem:[%s3 + $0x4] ss:$0 sm:$0xff]
    %v88 = vld [vmem:[%s3 + $0x5] ss:$0 sm:$0xff]
    %s89 = scalar_lea.vmem %s3, 6
    %v90 = vld [vmem:[%s89] ss:$8 sm:$0x3]
    %v91 = vld [vmem:[%s0] sm:$0xf]
    %v92 = vld [vmem:[%s0 + $0x4] sm:$0xf]
    %v95 = vunpack.c.l.b16 %v91
    %v96 = vunpack.c.l.b16 %v92
    %v97 = vpack.c.b16 %v96, %v95
    %v115 = vunpack.c.l.b16 %v19
    %v116 = vunpack.c.l.b16 %v20
    %v117 = vunpack.c.l.b16 %v21
    %v118 = vunpack.c.l.b16 %v22
    %v119 = vunpack.c.l.b16 %v23
    %v120 = vunpack.c.l.b16 %v24
    %v121 = vunpack.c.l.b16 %v25
    %v122 = vunpack.c.l.b16 %v26
    %v123 = vunpack.c.l.b16 %v27
    %v124 = vunpack.c.l.b16 %v28
    %v125 = vunpack.c.l.b16 %v29
    %v126 = vunpack.c.l.b16 %v30
    %v127 = vunpack.c.l.b16 %v31
    %v128 = vunpack.c.l.b16 %v32
    %v129 = vunpack.c.l.b16 %v33
    %v130 = vunpack.c.l.b16 %v34
    %v131 = vpack.c.b16 %v116, %v115
    %v132 = vpack.c.b16 %v118, %v117
    %v133 = vpack.c.b16 %v120, %v119
    %v134 = vpack.c.b16 %v122, %v121
    %v135 = vpack.c.b16 %v124, %v123
    %v136 = vpack.c.b16 %v126, %v125
    %v137 = vpack.c.b16 %v128, %v127
    %v138 = vpack.c.b16 %v130, %v129
    %147 = vmatprep.subr.bf16.mxu0 0
    %148 = vmatpush1.bf16.msra.mxu0 %v131
    %149 = vmatprep.subr.bf16.mxu0 0
    %150 = vmatpush1.bf16.msra.mxu0 %v132
    %151 = vmatprep.subr.bf16.mxu0 0
    %152 = vmatpush1.bf16.msra.mxu0 %v133
    %153 = vmatprep.subr.bf16.mxu0 0
    %154 = vmatpush1.bf16.msra.mxu0 %v134
    %155 = vmatprep.subr.bf16.mxu0 0
    %156 = vmatpush1.bf16.msra.mxu0 %v135
    %157 = vmatprep.subr.bf16.mxu0 0
    %158 = vmatpush1.bf16.msra.mxu0 %v136
    %159 = vmatprep.subr.bf16.mxu0 0
    %160 = vmatpush1.bf16.msra.mxu0 %v137
    %161 = vmatprep.subr.bf16.mxu0 0
    %162 = vmatpush1.bf16.msra.mxu0 %v138
    %163 = vmatprep.subr.bf16.mxu0 0
    %164 = vmatpush1.bf16.msra.mxu0 0
    %165 = vmatprep.subr.bf16.mxu0 0
    %166 = vmatpush1.bf16.msra.mxu0 0
    %167 = vmatprep.subr.bf16.mxu0 0
    %168 = vmatpush1.bf16.msra.mxu0 0
    %169 = vmatprep.subr.bf16.mxu0 0
    %170 = vmatpush1.bf16.msra.mxu0 0
    %171 = vmatprep.subr.bf16.mxu0 0
    %172 = vmatpush1.bf16.msra.mxu0 0
    %173 = vmatprep.subr.bf16.mxu0 0
    %174 = vmatpush1.bf16.msra.mxu0 0
    %175 = vmatprep.subr.bf16.mxu0 0
    %176 = vmatpush1.bf16.msra.mxu0 0
    %177 = vmatprep.subr.bf16.mxu0 0
    %178 = vmatpush1.bf16.msra.mxu0 0
    %179 = vmatprep.mubr.bf16.mxu0 0
    %180 = vmatmul.mubr.bf16.gmra.mrb[0].mxu0 %v97
    %v181 = vpop.f32.mrb[0].mxu0
    %v182 = vadd.f32 %v83, %v181
    %v183 = vpop.f32.mrb[0].mxu0
    %v184 = vpop.f32.mrb[0].mxu0
    %v185 = vadd.f32 %v83, %v184
    %v186 = vpop.f32.mrb[0].mxu0
    %187 = vdwg.mxu0
    %188 = vmatprep.subr.mxu0 0.0
    %189 = vmatpush1.msra.mxu0 %v67
    %190 = vmatprep.subr.mxu0 0.0
    %191 = vmatpush1.msra.mxu0 %v68
    %192 = vmatprep.subr.mxu0 0.0
    %193 = vmatpush1.msra.mxu0 %v69
    %194 = vmatprep.subr.mxu0 0.0
    %195 = vmatpush1.msra.mxu0 %v70
    %196 = vmatprep.subr.mxu0 0.0
    %197 = vmatpush1.msra.mxu0 %v71
    %198 = vmatprep.subr.mxu0 0.0
    %199 = vmatpush1.msra.mxu0 %v72
    %200 = vmatprep.subr.mxu0 0.0
    %201 = vmatpush1.msra.mxu0 %v73
    %202 = vmatprep.subr.mxu0 0.0
    %203 = vmatpush1.msra.mxu0 %v74
    %204 = vmatprep.subr.mxu0 0.0
    %205 = vmatpush1.msra.mxu0 %v75
    %206 = vmatprep.subr.mxu0 0.0
    %207 = vmatpush1.msra.mxu0 %v76
    %208 = vmatprep.subr.mxu0 0.0
    %209 = vmatpush1.msra.mxu0 %v77
    %210 = vmatprep.subr.mxu0 0.0
    %211 = vmatpush1.msra.mxu0 %v78
    %212 = vmatprep.subr.mxu0 0.0
    %213 = vmatpush1.msra.mxu0 %v79
    %214 = vmatprep.subr.mxu0 0.0
    %215 = vmatpush1.msra.mxu0 %v80
    %216 = vmatprep.subr.mxu0 0.0
    %217 = vmatpush1.msra.mxu0 %v81
    %218 = vmatprep.subr.mxu0 0.0
    %219 = vmatpush1.msra.mxu0 %v82
    %220 = vmatprep.subr.mxu0 0.0
    %221 = vmatpush1.msra.mxu0 0.0
    %222 = vmatprep.subr.mxu0 0.0
    %223 = vmatpush1.msra.mxu0 0.0
    %224 = vmatprep.subr.mxu0 0.0
    %225 = vmatpush1.msra.mxu0 0.0
    %226 = vmatprep.subr.mxu0 0.0
    %227 = vmatpush1.msra.mxu0 0.0
    %228 = vmatprep.subr.mxu0 0.0
    %229 = vmatpush1.msra.mxu0 0.0
    %230 = vmatprep.subr.mxu0 0.0
    %231 = vmatpush1.msra.mxu0 0.0
    %232 = vmatprep.subr.mxu0 0.0
    %233 = vmatpush1.msra.mxu0 0.0
    %234 = vmatprep.subr.mxu0 0.0
    %235 = vmatpush1.msra.mxu0 0.0
    %236 = vmatprep.subr.mxu0 0.0
    %237 = vmatpush1.msra.mxu0 0.0
    %238 = vmatprep.subr.mxu0 0.0
    %239 = vmatpush1.msra.mxu0 0.0
    %240 = vmatprep.subr.mxu0 0.0
    %241 = vmatpush1.msra.mxu0 0.0
    %242 = vmatprep.subr.mxu0 0.0
    %243 = vmatpush1.msra.mxu0 0.0
    %244 = vmatprep.subr.mxu0 0.0
    %245 = vmatpush1.msra.mxu0 0.0
    %246 = vmatprep.subr.mxu0 0.0
    %247 = vmatpush1.msra.mxu0 0.0
    %248 = vmatprep.subr.mxu0 0.0
    %249 = vmatpush1.msra.mxu0 0.0
    %250 = vmatprep.subr.mxu0 0.0
    %251 = vmatpush1.msra.mxu0 0.0
    %252 = vmatprep.mubr.f32.mxu0 0.0
    %253 = vmatmul.mubr.f32.gmra.mrb[0].mxu0 %v182
    %v254 = vpop.f32.mrb[0].mxu0
    %v255 = vadd.f32 0.0, %v254
    %v256 = vpop.f32.mrb[0].mxu0
    %257 = vmatprep.mubr.f32.mxu0 0.0
    %258 = vmatmul.mubr.f32.gmra.mrb[0].mxu0 %v185
    %v259 = vpop.f32.mrb[0].mxu0
    %v260 = vadd.f32 0.0, %v259
    %v261 = vpop.f32.mrb[0].mxu0
    %262 = vdwg.mxu0
    %v263 = vmul.f32 %v182, %v182
    %v264 = vmul.f32 %v185, %v185
    %265 = vmatprep.subr.mxu0 0.0
    %266 = vmatpush1.msra.mxu0 %v67
    %267 = vmatprep.subr.mxu0 0.0
    %268 = vmatpush1.msra.mxu0 %v68
    %269 = vmatprep.subr.mxu0 0.0
    %270 = vmatpush1.msra.mxu0 %v69
    %271 = vmatprep.subr.mxu0 0.0
    %272 = vmatpush1.msra.mxu0 %v70
    %273 = vmatprep.subr.mxu0 0.0
    %274 = vmatpush1.msra.mxu0 %v71
    %275 = vmatprep.subr.mxu0 0.0
    %276 = vmatpush1.msra.mxu0 %v72
    %277 = vmatprep.subr.mxu0 0.0
    %278 = vmatpush1.msra.mxu0 %v73
    %279 = vmatprep.subr.mxu0 0.0
    %280 = vmatpush1.msra.mxu0 %v74
    %281 = vmatprep.subr.mxu0 0.0
    %282 = vmatpush1.msra.mxu0 %v75
    %283 = vmatprep.subr.mxu0 0.0
    %284 = vmatpush1.msra.mxu0 %v76
    %285 = vmatprep.subr.mxu0 0.0
    %286 = vmatpush1.msra.mxu0 %v77
    %287 = vmatprep.subr.mxu0 0.0
    %288 = vmatpush1.msra.mxu0 %v78
    %289 = vmatprep.subr.mxu0 0.0
    %290 = vmatpush1.msra.mxu0 %v79
    %291 = vmatprep.subr.mxu0 0.0
    %292 = vmatpush1.msra.mxu0 %v80
    %293 = vmatprep.subr.mxu0 0.0
    %294 = vmatpush1.msra.mxu0 %v81
    %295 = vmatprep.subr.mxu0 0.0
    %296 = vmatpush1.msra.mxu0 %v82
    %297 = vmatprep.subr.mxu0 0.0
    %298 = vmatpush1.msra.mxu0 0.0
    %299 = vmatprep.subr.mxu0 0.0
    %300 = vmatpush1.msra.mxu0 0.0
    %301 = vmatprep.subr.mxu0 0.0
    %302 = vmatpush1.msra.mxu0 0.0
    %303 = vmatprep.subr.mxu0 0.0
    %304 = vmatpush1.msra.mxu0 0.0
    %305 = vmatprep.subr.mxu0 0.0
    %306 = vmatpush1.msra.mxu0 0.0
    %307 = vmatprep.subr.mxu0 0.0
    %308 = vmatpush1.msra.mxu0 0.0
    %309 = vmatprep.subr.mxu0 0.0
    %310 = vmatpush1.msra.mxu0 0.0
    %311 = vmatprep.subr.mxu0 0.0
    %312 = vmatpush1.msra.mxu0 0.0
    %313 = vmatprep.subr.mxu0 0.0
    %314 = vmatpush1.msra.mxu0 0.0
    %315 = vmatprep.subr.mxu0 0.0
    %316 = vmatpush1.msra.mxu0 0.0
    %317 = vmatprep.subr.mxu0 0.0
    %318 = vmatpush1.msra.mxu0 0.0
    %319 = vmatprep.subr.mxu0 0.0
    %320 = vmatpush1.msra.mxu0 0.0
    %321 = vmatprep.subr.mxu0 0.0
    %322 = vmatpush1.msra.mxu0 0.0
    %323 = vmatprep.subr.mxu0 0.0
    %324 = vmatpush1.msra.mxu0 0.0
    %325 = vmatprep.subr.mxu0 0.0
    %326 = vmatpush1.msra.mxu0 0.0
    %327 = vmatprep.subr.mxu0 0.0
    %328 = vmatpush1.msra.mxu0 0.0
    %329 = vmatprep.mubr.f32.mxu0 0.0
    %330 = vmatmul.mubr.f32.gmra.mrb[0].mxu0 %v263
    %v331 = vpop.f32.mrb[0].mxu0
    %v332 = vadd.f32 0.0, %v331
    %v333 = vpop.f32.mrb[0].mxu0
    %334 = vmatprep.mubr.f32.mxu0 0.0
    %335 = vmatmul.mubr.f32.gmra.mrb[0].mxu0 %v264
    %v336 = vpop.f32.mrb[0].mxu0
    %v337 = vadd.f32 0.0, %v336
    %v338 = vpop.f32.mrb[0].mxu0
    %339 = vdwg.mxu0
    %v340 = vmul.f32 %v255, %v255
    %v341 = vmul.f32 %v260, %v260
    %v342 = vsub.f32 %v332, %v340
    %v343 = vsub.f32 %v337, %v341
    %v344 = vmax.f32 %v342, 0.0
    %v345 = vmax.f32 %v343, 0.0
    %v346 = vsub.f32 %v182, %v255
    %v347 = vsub.f32 %v185, %v260
    %v348 = vadd.f32 %v344, 1e-05
    %v349 = vadd.f32 %v345, 1e-05
    %v350 = vrsqrt.pop %v348
    %v351 = vrsqrt.pop %v349
    %v352 = vmul.f32 %v346, %v350
    %v353 = vmul.f32 %v347, %v351
    %v354 = vmul.f32 %v352, %v84
    %v355 = vmul.f32 %v353, %v84
    %v356 = vadd.f32 %v354, %v85
    %v357 = vadd.f32 %v355, %v85
    %v358 = vmax.f32 %v356, 0.0
    %v359 = vmax.f32 %v357, 0.0
    %v360 = vpack.c.bf16 %v359, %v358
    %v377 = vunpack.c.l.b16 %v35
    %v378 = vunpack.c.l.b16 %v36
    %v379 = vunpack.c.l.b16 %v37
    %v380 = vunpack.c.l.b16 %v38
    %v381 = vunpack.c.l.b16 %v39
    %v382 = vunpack.c.l.b16 %v40
    %v383 = vunpack.c.l.b16 %v41
    %v384 = vunpack.c.l.b16 %v42
    %v385 = vunpack.c.l.b16 %v43
    %v386 = vunpack.c.l.b16 %v44
    %v387 = vunpack.c.l.b16 %v45
    %v388 = vunpack.c.l.b16 %v46
    %v389 = vunpack.c.l.b16 %v47
    %v390 = vunpack.c.l.b16 %v48
    %v391 = vunpack.c.l.b16 %v49
    %v392 = vunpack.c.l.b16 %v50
    %v393 = vpack.c.b16 %v378, %v377
    %v394 = vpack.c.b16 %v380, %v379
    %v395 = vpack.c.b16 %v382, %v381
    %v396 = vpack.c.b16 %v384, %v383
    %v397 = vpack.c.b16 %v386, %v385
    %v398 = vpack.c.b16 %v388, %v387
    %v399 = vpack.c.b16 %v390, %v389
    %v400 = vpack.c.b16 %v392, %v391
    %409 = vmatprep.subr.bf16.mxu0 0
    %410 = vmatpush1.bf16.msra.mxu0 %v393
    %411 = vmatprep.subr.bf16.mxu0 0
    %412 = vmatpush1.bf16.msra.mxu0 %v394
    %413 = vmatprep.subr.bf16.mxu0 0
    %414 = vmatpush1.bf16.msra.mxu0 %v395
    %415 = vmatprep.subr.bf16.mxu0 0
    %416 = vmatpush1.bf16.msra.mxu0 %v396
    %417 = vmatprep.subr.bf16.mxu0 0
    %418 = vmatpush1.bf16.msra.mxu0 %v397
    %419 = vmatprep.subr.bf16.mxu0 0
    %420 = vmatpush1.bf16.msra.mxu0 %v398
    %421 = vmatprep.subr.bf16.mxu0 0
    %422 = vmatpush1.bf16.msra.mxu0 %v399
    %423 = vmatprep.subr.bf16.mxu0 0
    %424 = vmatpush1.bf16.msra.mxu0 %v400
    %425 = vmatprep.subr.bf16.mxu0 0
    %426 = vmatpush1.bf16.msra.mxu0 0
    %427 = vmatprep.subr.bf16.mxu0 0
    %428 = vmatpush1.bf16.msra.mxu0 0
    %429 = vmatprep.subr.bf16.mxu0 0
    %430 = vmatpush1.bf16.msra.mxu0 0
    %431 = vmatprep.subr.bf16.mxu0 0
    %432 = vmatpush1.bf16.msra.mxu0 0
    %433 = vmatprep.subr.bf16.mxu0 0
    %434 = vmatpush1.bf16.msra.mxu0 0
    %435 = vmatprep.subr.bf16.mxu0 0
    %436 = vmatpush1.bf16.msra.mxu0 0
    %437 = vmatprep.subr.bf16.mxu0 0
    %438 = vmatpush1.bf16.msra.mxu0 0
    %439 = vmatprep.subr.bf16.mxu0 0
    %440 = vmatpush1.bf16.msra.mxu0 0
    %441 = vmatprep.mubr.bf16.mxu0 0
    %442 = vmatmul.mubr.bf16.gmra.mrb[0].mxu0 %v360
    %v443 = vpop.f32.mrb[0].mxu0
    %v444 = vadd.f32 %v86, %v443
    %v445 = vpop.f32.mrb[0].mxu0
    %v446 = vpop.f32.mrb[0].mxu0
    %v447 = vadd.f32 %v86, %v446
    %v448 = vpop.f32.mrb[0].mxu0
    %449 = vdwg.mxu0
    %450 = vmatprep.subr.mxu0 0.0
    %451 = vmatpush1.msra.mxu0 %v67
    %452 = vmatprep.subr.mxu0 0.0
    %453 = vmatpush1.msra.mxu0 %v68
    %454 = vmatprep.subr.mxu0 0.0
    %455 = vmatpush1.msra.mxu0 %v69
    %456 = vmatprep.subr.mxu0 0.0
    %457 = vmatpush1.msra.mxu0 %v70
    %458 = vmatprep.subr.mxu0 0.0
    %459 = vmatpush1.msra.mxu0 %v71
    %460 = vmatprep.subr.mxu0 0.0
    %461 = vmatpush1.msra.mxu0 %v72
    %462 = vmatprep.subr.mxu0 0.0
    %463 = vmatpush1.msra.mxu0 %v73
    %464 = vmatprep.subr.mxu0 0.0
    %465 = vmatpush1.msra.mxu0 %v74
    %466 = vmatprep.subr.mxu0 0.0
    %467 = vmatpush1.msra.mxu0 %v75
    %468 = vmatprep.subr.mxu0 0.0
    %469 = vmatpush1.msra.mxu0 %v76
    %470 = vmatprep.subr.mxu0 0.0
    %471 = vmatpush1.msra.mxu0 %v77
    %472 = vmatprep.subr.mxu0 0.0
    %473 = vmatpush1.msra.mxu0 %v78
    %474 = vmatprep.subr.mxu0 0.0
    %475 = vmatpush1.msra.mxu0 %v79
    %476 = vmatprep.subr.mxu0 0.0
    %477 = vmatpush1.msra.mxu0 %v80
    %478 = vmatprep.subr.mxu0 0.0
    %479 = vmatpush1.msra.mxu0 %v81
    %480 = vmatprep.subr.mxu0 0.0
    %481 = vmatpush1.msra.mxu0 %v82
    %482 = vmatprep.subr.mxu0 0.0
    %483 = vmatpush1.msra.mxu0 0.0
    %484 = vmatprep.subr.mxu0 0.0
    %485 = vmatpush1.msra.mxu0 0.0
    %486 = vmatprep.subr.mxu0 0.0
    %487 = vmatpush1.msra.mxu0 0.0
    %488 = vmatprep.subr.mxu0 0.0
    %489 = vmatpush1.msra.mxu0 0.0
    %490 = vmatprep.subr.mxu0 0.0
    %491 = vmatpush1.msra.mxu0 0.0
    %492 = vmatprep.subr.mxu0 0.0
    %493 = vmatpush1.msra.mxu0 0.0
    %494 = vmatprep.subr.mxu0 0.0
    %495 = vmatpush1.msra.mxu0 0.0
    %496 = vmatprep.subr.mxu0 0.0
    %497 = vmatpush1.msra.mxu0 0.0
    %498 = vmatprep.subr.mxu0 0.0
    %499 = vmatpush1.msra.mxu0 0.0
    %500 = vmatprep.subr.mxu0 0.0
    %501 = vmatpush1.msra.mxu0 0.0
    %502 = vmatprep.subr.mxu0 0.0
    %503 = vmatpush1.msra.mxu0 0.0
    %504 = vmatprep.subr.mxu0 0.0
    %505 = vmatpush1.msra.mxu0 0.0
    %506 = vmatprep.subr.mxu0 0.0
    %507 = vmatpush1.msra.mxu0 0.0
    %508 = vmatprep.subr.mxu0 0.0
    %509 = vmatpush1.msra.mxu0 0.0
    %510 = vmatprep.subr.mxu0 0.0
    %511 = vmatpush1.msra.mxu0 0.0
    %512 = vmatprep.subr.mxu0 0.0
    %513 = vmatpush1.msra.mxu0 0.0
    %514 = vmatprep.mubr.f32.mxu0 0.0
    %515 = vmatmul.mubr.f32.gmra.mrb[0].mxu0 %v444
    %v516 = vpop.f32.mrb[0].mxu0
    %v517 = vadd.f32 0.0, %v516
    %v518 = vpop.f32.mrb[0].mxu0
    %519 = vmatprep.mubr.f32.mxu0 0.0
    %520 = vmatmul.mubr.f32.gmra.mrb[0].mxu0 %v447
    %v521 = vpop.f32.mrb[0].mxu0
    %v522 = vadd.f32 0.0, %v521
    %v523 = vpop.f32.mrb[0].mxu0
    %524 = vdwg.mxu0
    %v525 = vmul.f32 %v444, %v444
    %v526 = vmul.f32 %v447, %v447
    %527 = vmatprep.subr.mxu0 0.0
    %528 = vmatpush1.msra.mxu0 %v67
    %529 = vmatprep.subr.mxu0 0.0
    %530 = vmatpush1.msra.mxu0 %v68
    %531 = vmatprep.subr.mxu0 0.0
    %532 = vmatpush1.msra.mxu0 %v69
    %533 = vmatprep.subr.mxu0 0.0
    %534 = vmatpush1.msra.mxu0 %v70
    %535 = vmatprep.subr.mxu0 0.0
    %536 = vmatpush1.msra.mxu0 %v71
    %537 = vmatprep.subr.mxu0 0.0
    %538 = vmatpush1.msra.mxu0 %v72
    %539 = vmatprep.subr.mxu0 0.0
    %540 = vmatpush1.msra.mxu0 %v73
    %541 = vmatprep.subr.mxu0 0.0
    %542 = vmatpush1.msra.mxu0 %v74
    %543 = vmatprep.subr.mxu0 0.0
    %544 = vmatpush1.msra.mxu0 %v75
    %545 = vmatprep.subr.mxu0 0.0
    %546 = vmatpush1.msra.mxu0 %v76
    %547 = vmatprep.subr.mxu0 0.0
    %548 = vmatpush1.msra.mxu0 %v77
    %549 = vmatprep.subr.mxu0 0.0
    %550 = vmatpush1.msra.mxu0 %v78
    %551 = vmatprep.subr.mxu0 0.0
    %552 = vmatpush1.msra.mxu0 %v79
    %553 = vmatprep.subr.mxu0 0.0
    %554 = vmatpush1.msra.mxu0 %v80
    %555 = vmatprep.subr.mxu0 0.0
    %556 = vmatpush1.msra.mxu0 %v81
    %557 = vmatprep.subr.mxu0 0.0
    %558 = vmatpush1.msra.mxu0 %v82
    %559 = vmatprep.subr.mxu0 0.0
    %560 = vmatpush1.msra.mxu0 0.0
    %561 = vmatprep.subr.mxu0 0.0
    %562 = vmatpush1.msra.mxu0 0.0
    %563 = vmatprep.subr.mxu0 0.0
    %564 = vmatpush1.msra.mxu0 0.0
    %565 = vmatprep.subr.mxu0 0.0
    %566 = vmatpush1.msra.mxu0 0.0
    %567 = vmatprep.subr.mxu0 0.0
    %568 = vmatpush1.msra.mxu0 0.0
    %569 = vmatprep.subr.mxu0 0.0
    %570 = vmatpush1.msra.mxu0 0.0
    %571 = vmatprep.subr.mxu0 0.0
    %572 = vmatpush1.msra.mxu0 0.0
    %573 = vmatprep.subr.mxu0 0.0
    %574 = vmatpush1.msra.mxu0 0.0
    %575 = vmatprep.subr.mxu0 0.0
    %576 = vmatpush1.msra.mxu0 0.0
    %577 = vmatprep.subr.mxu0 0.0
    %578 = vmatpush1.msra.mxu0 0.0
    %579 = vmatprep.subr.mxu0 0.0
    %580 = vmatpush1.msra.mxu0 0.0
    %581 = vmatprep.subr.mxu0 0.0
    %582 = vmatpush1.msra.mxu0 0.0
    %583 = vmatprep.subr.mxu0 0.0
    %584 = vmatpush1.msra.mxu0 0.0
    %585 = vmatprep.subr.mxu0 0.0
    %586 = vmatpush1.msra.mxu0 0.0
    %587 = vmatprep.subr.mxu0 0.0
    %588 = vmatpush1.msra.mxu0 0.0
    %589 = vmatprep.subr.mxu0 0.0
    %590 = vmatpush1.msra.mxu0 0.0
    %591 = vmatprep.mubr.f32.mxu0 0.0
    %592 = vmatmul.mubr.f32.gmra.mrb[0].mxu0 %v525
    %v593 = vpop.f32.mrb[0].mxu0
    %v594 = vadd.f32 0.0, %v593
    %v595 = vpop.f32.mrb[0].mxu0
    %596 = vmatprep.mubr.f32.mxu0 0.0
    %597 = vmatmul.mubr.f32.gmra.mrb[0].mxu0 %v526
    %v598 = vpop.f32.mrb[0].mxu0
    %v599 = vadd.f32 0.0, %v598
    %v600 = vpop.f32.mrb[0].mxu0
    %601 = vdwg.mxu0
    %v602 = vmul.f32 %v517, %v517
    %v603 = vmul.f32 %v522, %v522
    %v604 = vsub.f32 %v594, %v602
    %v605 = vsub.f32 %v599, %v603
    %v606 = vmax.f32 %v604, 0.0
    %v607 = vmax.f32 %v605, 0.0
    %v608 = vsub.f32 %v444, %v517
    %v609 = vsub.f32 %v447, %v522
    %v610 = vadd.f32 %v606, 1e-05
    %v611 = vadd.f32 %v607, 1e-05
    %v612 = vrsqrt.pop %v610
    %v613 = vrsqrt.pop %v611
    %v614 = vmul.f32 %v608, %v612
    %v615 = vmul.f32 %v609, %v613
    %v616 = vmul.f32 %v614, %v87
    %v617 = vmul.f32 %v615, %v87
    %v618 = vadd.f32 %v616, %v88
    %v619 = vadd.f32 %v617, %v88
    %v620 = vmax.f32 %v618, 0.0
    %v621 = vmax.f32 %v619, 0.0
    %v622 = vpack.c.bf16 %v621, %v620
    %v624 = vlaneseq
    %v625 = vshrl.u32 %v624, 7
    %v626 = vsub.s32 0, %v625
    %v627 = vrot.slane %v90, %v626
    %v628 = vlaneseq
    %v629 = vshrl.u32 %v628, 7
    %v630 = vsub.s32 1, %v629
    %v631 = vrot.slane %v90, %v630
    %v650 = vunpack.c.l.b16 %v51
    %v651 = vunpack.c.h.b16 %v51
    %v652 = vunpack.c.l.b16 %v52
    %v653 = vunpack.c.h.b16 %v52
    %v654 = vunpack.c.l.b16 %v53
    %v655 = vunpack.c.h.b16 %v53
    %v656 = vunpack.c.l.b16 %v54
    %v657 = vunpack.c.h.b16 %v54
    %v658 = vunpack.c.l.b16 %v55
    %v659 = vunpack.c.h.b16 %v55
    %v660 = vunpack.c.l.b16 %v56
    %v661 = vunpack.c.h.b16 %v56
    %v662 = vunpack.c.l.b16 %v57
    %v663 = vunpack.c.h.b16 %v57
    %v664 = vunpack.c.l.b16 %v58
    %v665 = vunpack.c.h.b16 %v58
    %v666 = vunpack.c.l.b16 %v59
    %v667 = vunpack.c.h.b16 %v59
    %v668 = vunpack.c.l.b16 %v60
    %v669 = vunpack.c.h.b16 %v60
    %v670 = vunpack.c.l.b16 %v61
    %v671 = vunpack.c.h.b16 %v61
    %v672 = vunpack.c.l.b16 %v62
    %v673 = vunpack.c.h.b16 %v62
    %v674 = vunpack.c.l.b16 %v63
    %v675 = vunpack.c.h.b16 %v63
    %v676 = vunpack.c.l.b16 %v64
    %v677 = vunpack.c.h.b16 %v64
    %v678 = vunpack.c.l.b16 %v65
    %v679 = vunpack.c.h.b16 %v65
    %v680 = vunpack.c.l.b16 %v66
    %v681 = vunpack.c.h.b16 %v66
    %v682 = vpack.c.b16 %v652, %v650
    %v683 = vpack.c.b16 %v653, %v651
    %v684 = vpack.c.b16 %v656, %v654
    %v685 = vpack.c.b16 %v657, %v655
    %v686 = vpack.c.b16 %v660, %v658
    %v687 = vpack.c.b16 %v661, %v659
    %v688 = vpack.c.b16 %v664, %v662
    %v689 = vpack.c.b16 %v665, %v663
    %v690 = vpack.c.b16 %v668, %v666
    %v691 = vpack.c.b16 %v669, %v667
    %v692 = vpack.c.b16 %v672, %v670
    %v693 = vpack.c.b16 %v673, %v671
    %v694 = vpack.c.b16 %v676, %v674
    %v695 = vpack.c.b16 %v677, %v675
    %v696 = vpack.c.b16 %v680, %v678
    %v697 = vpack.c.b16 %v681, %v679
    %714 = vmatprep.subr.bf16.mxu0 %v683
    %715 = vmatpush1.bf16.msra.mxu0 %v682
    %716 = vmatprep.subr.bf16.mxu0 %v685
    %717 = vmatpush1.bf16.msra.mxu0 %v684
    %718 = vmatprep.subr.bf16.mxu0 %v687
    %719 = vmatpush1.bf16.msra.mxu0 %v686
    %720 = vmatprep.subr.bf16.mxu0 %v689
    %721 = vmatpush1.bf16.msra.mxu0 %v688
    %722 = vmatprep.subr.bf16.mxu0 %v691
    %723 = vmatpush1.bf16.msra.mxu0 %v690
    %724 = vmatprep.subr.bf16.mxu0 %v693
    %725 = vmatpush1.bf16.msra.mxu0 %v692
    %726 = vmatprep.subr.bf16.mxu0 %v695
    %727 = vmatpush1.bf16.msra.mxu0 %v694
    %728 = vmatprep.subr.bf16.mxu0 %v697
    %729 = vmatpush1.bf16.msra.mxu0 %v696
    %730 = vmatprep.subr.bf16.mxu0 0
    %731 = vmatpush1.bf16.msra.mxu0 0
    %732 = vmatprep.subr.bf16.mxu0 0
    %733 = vmatpush1.bf16.msra.mxu0 0
    %734 = vmatprep.subr.bf16.mxu0 0
    %735 = vmatpush1.bf16.msra.mxu0 0
    %736 = vmatprep.subr.bf16.mxu0 0
    %737 = vmatpush1.bf16.msra.mxu0 0
    %738 = vmatprep.subr.bf16.mxu0 0
    %739 = vmatpush1.bf16.msra.mxu0 0
    %740 = vmatprep.subr.bf16.mxu0 0
    %741 = vmatpush1.bf16.msra.mxu0 0
    %742 = vmatprep.subr.bf16.mxu0 0
    %743 = vmatpush1.bf16.msra.mxu0 0
    %744 = vmatprep.subr.bf16.mxu0 0
    %745 = vmatpush1.bf16.msra.mxu0 0
    %746 = vmatprep.mubr.bf16.mxu0 0
    %747 = vmatmul.mubr.bf16.gmra.mrb[0].mxu0 %v622
    %v748 = vpop.f32.mrb[0].mxu0
    %v749 = vadd.f32 %v627, %v748
    %v750 = vpop.f32.mrb[0].mxu0
    %v751 = vadd.f32 %v631, %v750
    %v752 = vpop.f32.mrb[0].mxu0
    %v753 = vadd.f32 %v627, %v752
    %v754 = vpop.f32.mrb[0].mxu0
    %v755 = vadd.f32 %v631, %v754
    %756 = vdwg.mxu0
    %757 = vst [vmem:[#allocation2] sm:$0xff] %v749
    %vm758 = vcmask 261120
    %759 = vst.msk [vmem:[#allocation2 + $0x8] sm:$0xff] %vm758, %v751
    %760 = vst [vmem:[#allocation2 + $0x10] sm:$0xff] %v753
    %761 = vst.msk [vmem:[#allocation2 + $0x18] sm:$0xff] %vm758, %v755
    // Predicated region
    $region18: #{tpu_custom_call.1} parent=1 // pred_check
      _
    $region19: #{tpu_custom_call.1} parent=1 // pred_check_branch
      %763 = sbr.rel (0) target = $region21
    $region20: #{tpu_custom_call.1} parent=1 // pred_region
      %s765 = ssub.s32 512, 512
      %766 = vsyncadd [#allocation3], %s765
      %s767 = sshll.u32 [#allocation2], 4
      %s768 = int_to_ptr.vmem [resolvable:$true] %s767
      %773 = dma.vmem_to_hbm [thread:$0]  %s768, 512, %s4, [#allocation3], 256, 256, 16
    $region21: #{tpu_custom_call.1} parent=1 // pred_fallthru
      _
    // Predicated region
    $region22: #{tpu_custom_call.1} parent=1 // pred_check
      _
    $region23: #{tpu_custom_call.1} parent=1 // pred_check_branch
      %775 = sbr.rel (0) target = $region25
    $region24: #{tpu_custom_call.1} parent=1 // pred_region
      %776 = dma.done [#allocation3], 512
    $region25: #{tpu_custom_call.1} parent=1 // pred_fallthru
      _
    %777 = vsyncpa [#allocation3], 1

</llo_original>
